<compile_context>
chip_gen: v6e
topology: v6e:2x2x1
jax: 0.10.0
libtpu: 0.0.40
codegen_flags: <defaults>
</compile_context>

<pallas_src>
import functools

import jax
import jax.numpy as jnp
from jax.experimental import pallas as pl
from jax.experimental.pallas import tpu as pltpu

_LANE = 128
_MAX_TS = 1024   # rows of 128 points per grid step (131072 points, 6 MiB dbuf)


def _project3d_kernel(p_ref, pts_ref, out_ref, *, eps):
    """Per-step tiles:
      p_ref   : SMEM (B, 12)           pre-scaled rows of P = K @ T (row-major 3x4)
      pts_ref : VMEM (1, 4, TS, 128)   homogeneous points [x, y, z, w]
      out_ref : VMEM (1, 2, TS, 128)   normalized pixel coords in [-1, 1]
    """
    b = pl.program_id(0)

    # Dense (TS, 128) slabs -> full sublane occupancy; cast to f32 in VMEM.
    x = pts_ref[0, 0].astype(jnp.float32)
    y = pts_ref[0, 1].astype(jnp.float32)
    z = pts_ref[0, 2].astype(jnp.float32)
    w = pts_ref[0, 3].astype(jnp.float32)

    def proj_row(r):
        return (p_ref[b, 4 * r + 0] * x
                + p_ref[b, 4 * r + 1] * y
                + p_ref[b, 4 * r + 2] * z
                + p_ref[b, 4 * r + 3] * w)

    cam_x = proj_row(0)          # already scaled by 2 / (W - 1)
    cam_y = proj_row(1)          # already scaled by 2 / (H - 1)
    d = proj_row(2) + eps        # cam_z + eps

    # Approx reciprocal on the EUP slot + one Newton-Raphson step (~f32 accurate).
    inv_d = pl.reciprocal(d, approx=True)
    inv_d = inv_d * (2.0 - d * inv_d)

    out_ref[0, 0] = (cam_x * inv_d - 1.0).astype(out_ref.dtype)
    out_ref[0, 1] = (cam_y * inv_d - 1.0).astype(out_ref.dtype)


def _choose_tile_rows(nrows):
    """Pick TS (rows of 128 points per step) and the padded row count."""
    if nrows <= _MAX_TS:
        # Single chunk along the row axis: block dim == full array dim, so the
        # multiple-of-8 constraint does not apply.
        return nrows, nrows
    # Prefer a multiple-of-8 divisor of nrows (no padding, no extra HBM pass).
    ts = (_MAX_TS // 8) * 8
    while ts >= 128:
        if nrows % ts == 0:
            return ts, nrows
        ts -= 8
    # Rare fallback: pad the row axis up to a multiple of _MAX_TS.
    ts = _MAX_TS
    nrows_p = ((nrows + ts - 1) // ts) * ts
    return ts, nrows_p


def project3d(points, K, T, batch_size, height, width, eps=1e-7):
    """points: (B, 4, H*W), K: (B, 4, 4), T: (B, 4, 4) -> (B, H, W, 2)."""
    B, H, W = batch_size, height, width
    HW = H * W
    assert points.shape == (B, 4, HW)
    assert K.shape == (B, 4, 4) and T.shape == (B, 4, 4)

    # Hoisted 4x4 matmul + fold the normalization scale into rows 0/1 of P.
    hp = jax.lax.Precision.HIGHEST
    P = jnp.matmul(K.astype(jnp.float32), T.astype(jnp.float32), precision=hp)
    P = P[:, :3, :]                                                # (B, 3, 4)
    scale = jnp.array([2.0 / (W - 1), 2.0 / (H - 1), 1.0],
                      dtype=jnp.float32).reshape(1, 3, 1)
    P_flat = (P * scale).reshape(B, 12)                            # (B, 12)

    nrows = (HW + _LANE - 1) // _LANE
    TS, nrows_p = _choose_tile_rows(nrows)
    HWp = nrows_p * _LANE
    n_chunks = nrows_p // TS

    pts = points                      # keep native dtype; cast inside the kernel
    if HWp != HW:
        pts = jnp.pad(pts, ((0, 0), (0, 0), (0, HWp - HW)))
    pts = pts.reshape(B, 4, nrows_p, _LANE)       # free (row-major compatible)

    kernel = functools.partial(_project3d_kernel, eps=float(eps))

    pix = pl.pallas_call(
        kernel,
        out_shape=jax.ShapeDtypeStruct((B, 2, nrows_p, _LANE), jnp.float32),
        grid_spec=pltpu.PrefetchScalarGridSpec(
            num_scalar_prefetch=1,                      # P_flat -> SMEM
            grid=(B, n_chunks),
            in_specs=[
                pl.BlockSpec((1, 4, TS, _LANE), lambda b, j, p: (b, 0, j, 0)),
            ],
            out_specs=pl.BlockSpec((1, 2, TS, _LANE), lambda b, j, p: (b, 0, j, 0)),
        ),
        compiler_params=pltpu.CompilerParams(
            dimension_semantics=("parallel", "parallel")),
    )(P_flat, pts)

    # Epilogue (XLA): channel-first slab -> (B, H, W, 2)   (matches .view + .permute)
    pix = pix.reshape(B, 2, HWp)[:, :, :HW].reshape(B, 2, H, W)
    return jnp.transpose(pix, (0, 2, 3, 1))


def _reference(points, K, T, batch_size, height, width, eps=1e-7):
    hp = jax.lax.Precision.HIGHEST
    P = jnp.matmul(K, T, precision=hp)[:, :3, :]
    cam = jnp.matmul(P, points, precision=hp)
    pix = cam[:, :2, :] / (cam[:, 2:3, :] + eps)
    pix = pix.reshape(batch_size, 2, height, width)
    pix = jnp.transpose(pix, (0, 2, 3, 1))
    pix = pix.at[..., 0].divide(width - 1)
    pix = pix.at[..., 1].divide(height - 1)
    return (pix - 0.5) * 2.0


if __name__ == "__main__":
    B, H, W = 2, 16, 16
    HW = H * W
    key = jax.random.PRNGKey(0)
    k_xy, k_z, k_k, k_t = jax.random.split(key, 4)

    # Homogeneous 3D points (B, 4, HW) with positive, bounded depth (row 2),
    # so the projective divide is well-conditioned for the tolerance check.
    xy = jax.random.normal(k_xy, (B, 2, HW), dtype=jnp.float32)
    depth = 1.0 + jax.random.uniform(k_z, (B, 1, HW), dtype=jnp.float32,
                                     minval=0.0, maxval=4.0)
    points = jnp.concatenate(
        [xy * depth, depth, jnp.ones((B, 1, HW), jnp.float32)], axis=1)

    # Intrinsics-like K and extrinsics-like T (deterministic, synthetic).
    base_K = jnp.array([[W * 0.5, 0.0, W * 0.5, 0.0],
                        [0.0, H * 0.5, H * 0.5, 0.0],
                        [0.0, 0.0, 1.0, 0.0],
                        [0.0, 0.0, 0.0, 1.0]], dtype=jnp.float32)
    K = (jnp.broadcast_to(base_K, (B, 4, 4))
         + 0.01 * jax.random.normal(k_k, (B, 4, 4), dtype=jnp.float32))
    T = (jnp.broadcast_to(jnp.eye(4, dtype=jnp.float32), (B, 4, 4))
         + 0.01 * jax.random.normal(k_t, (B, 4, 4), dtype=jnp.float32))

    out = project3d(points, K, T, B, H, W)
    out = jax.block_until_ready(out)

    ref = _reference(points, K, T, B, H, W)
    assert out.shape == (B, H, W, 2)
    assert jnp.allclose(out, ref, atol=1e-4, rtol=1e-4), "mismatch vs reference"

    print("KERNEL_OK")
</pallas_src>

<mosaic_0001>
module attributes {stable_mosaic.version = 11 : i64} {
  func.func @_project3d_kernel(%arg0: i32, %arg1: i32, %arg2: memref<2x12xf32, #tpu.memory_space<smem>>, %arg3: memref<1x4x2x128xf32, #tpu.memory_space<vmem>>, %arg4: memref<1x2x2x128xf32, #tpu.memory_space<vmem>>) attributes {dimension_semantics = [#tpu.dimension_semantics<parallel>, #tpu.dimension_semantics<parallel>], iteration_bounds = array<i64: 2, 1>, scalar_prefetch = 1 : i64, scratch_operands = 0 : i64, tpu.core_type = #tpu.core_type<tc>, window_params = [{transform_indices = @transform_0, window_bounds = array<i64: 1, 4, 2, 128>}, {transform_indices = @transform_1, window_bounds = array<i64: 1, 2, 2, 128>}]} {
    %c0 = arith.constant 0 : index
    %c0_0 = arith.constant 0 : index
    %c0_1 = arith.constant 0 : index
    %c0_2 = arith.constant 0 : index
    %0 = vector.load %arg3[%c0, %c0_0, %c0_1, %c0_2] : memref<1x4x2x128xf32, #tpu.memory_space<vmem>>, vector<1x1x2x128xf32>
    %1 = vector.shape_cast %0 : vector<1x1x2x128xf32> to vector<2x128xf32>
    %c0_3 = arith.constant 0 : index
    %c1 = arith.constant 1 : index
    %c0_4 = arith.constant 0 : index
    %c0_5 = arith.constant 0 : index
    %2 = vector.load %arg3[%c0_3, %c1, %c0_4, %c0_5] : memref<1x4x2x128xf32, #tpu.memory_space<vmem>>, vector<1x1x2x128xf32>
    %3 = vector.shape_cast %2 : vector<1x1x2x128xf32> to vector<2x128xf32>
    %c0_6 = arith.constant 0 : index
    %c2 = arith.constant 2 : index
    %c0_7 = arith.constant 0 : index
    %c0_8 = arith.constant 0 : index
    %4 = vector.load %arg3[%c0_6, %c2, %c0_7, %c0_8] : memref<1x4x2x128xf32, #tpu.memory_space<vmem>>, vector<1x1x2x128xf32>
    %5 = vector.shape_cast %4 : vector<1x1x2x128xf32> to vector<2x128xf32>
    %c0_9 = arith.constant 0 : index
    %c3 = arith.constant 3 : index
    %c0_10 = arith.constant 0 : index
    %c0_11 = arith.constant 0 : index
    %6 = vector.load %arg3[%c0_9, %c3, %c0_10, %c0_11] : memref<1x4x2x128xf32, #tpu.memory_space<vmem>>, vector<1x1x2x128xf32>
    %7 = vector.shape_cast %6 : vector<1x1x2x128xf32> to vector<2x128xf32>
    %8 = arith.index_cast %arg0 : i32 to index
    %c0_12 = arith.constant 0 : index
    %9 = memref.load %arg2[%8, %c0_12] : memref<2x12xf32, #tpu.memory_space<smem>>
    %10 = vector.broadcast %9 : f32 to vector<2x128xf32>
    %11 = arith.mulf %10, %1 : vector<2x128xf32>
    %12 = arith.index_cast %arg0 : i32 to index
    %c1_13 = arith.constant 1 : index
    %13 = memref.load %arg2[%12, %c1_13] : memref<2x12xf32, #tpu.memory_space<smem>>
    %14 = vector.broadcast %13 : f32 to vector<2x128xf32>
    %15 = arith.mulf %14, %3 : vector<2x128xf32>
    %16 = arith.addf %11, %15 : vector<2x128xf32>
    %17 = arith.index_cast %arg0 : i32 to index
    %c2_14 = arith.constant 2 : index
    %18 = memref.load %arg2[%17, %c2_14] : memref<2x12xf32, #tpu.memory_space<smem>>
    %19 = vector.broadcast %18 : f32 to vector<2x128xf32>
    %20 = arith.mulf %19, %5 : vector<2x128xf32>
    %21 = arith.addf %16, %20 : vector<2x128xf32>
    %22 = arith.index_cast %arg0 : i32 to index
    %c3_15 = arith.constant 3 : index
    %23 = memref.load %arg2[%22, %c3_15] : memref<2x12xf32, #tpu.memory_space<smem>>
    %24 = vector.broadcast %23 : f32 to vector<2x128xf32>
    %25 = arith.mulf %24, %7 : vector<2x128xf32>
    %26 = arith.addf %21, %25 : vector<2x128xf32>
    %27 = arith.index_cast %arg0 : i32 to index
    %c4 = arith.constant 4 : index
    %28 = memref.load %arg2[%27, %c4] : memref<2x12xf32, #tpu.memory_space<smem>>
    %29 = vector.broadcast %28 : f32 to vector<2x128xf32>
    %30 = arith.mulf %29, %1 : vector<2x128xf32>
    %31 = arith.index_cast %arg0 : i32 to index
    %c5 = arith.constant 5 : index
    %32 = memref.load %arg2[%31, %c5] : memref<2x12xf32, #tpu.memory_space<smem>>
    %33 = vector.broadcast %32 : f32 to vector<2x128xf32>
    %34 = arith.mulf %33, %3 : vector<2x128xf32>
    %35 = arith.addf %30, %34 : vector<2x128xf32>
    %36 = arith.index_cast %arg0 : i32 to index
    %c6 = arith.constant 6 : index
    %37 = memref.load %arg2[%36, %c6] : memref<2x12xf32, #tpu.memory_space<smem>>
    %38 = vector.broadcast %37 : f32 to vector<2x128xf32>
    %39 = arith.mulf %38, %5 : vector<2x128xf32>
    %40 = arith.addf %35, %39 : vector<2x128xf32>
    %41 = arith.index_cast %arg0 : i32 to index
    %c7 = arith.constant 7 : index
    %42 = memref.load %arg2[%41, %c7] : memref<2x12xf32, #tpu.memory_space<smem>>
    %43 = vector.broadcast %42 : f32 to vector<2x128xf32>
    %44 = arith.mulf %43, %7 : vector<2x128xf32>
    %45 = arith.addf %40, %44 : vector<2x128xf32>
    %46 = arith.index_cast %arg0 : i32 to index
    %c8 = arith.constant 8 : index
    %47 = memref.load %arg2[%46, %c8] : memref<2x12xf32, #tpu.memory_space<smem>>
    %48 = vector.broadcast %47 : f32 to vector<2x128xf32>
    %49 = arith.mulf %48, %1 : vector<2x128xf32>
    %50 = arith.index_cast %arg0 : i32 to index
    %c9 = arith.constant 9 : index
    %51 = memref.load %arg2[%50, %c9] : memref<2x12xf32, #tpu.memory_space<smem>>
    %52 = vector.broadcast %51 : f32 to vector<2x128xf32>
    %53 = arith.mulf %52, %3 : vector<2x128xf32>
    %54 = arith.addf %49, %53 : vector<2x128xf32>
    %55 = arith.index_cast %arg0 : i32 to index
    %c10 = arith.constant 10 : index
    %56 = memref.load %arg2[%55, %c10] : memref<2x12xf32, #tpu.memory_space<smem>>
    %57 = vector.broadcast %56 : f32 to vector<2x128xf32>
    %58 = arith.mulf %57, %5 : vector<2x128xf32>
    %59 = arith.addf %54, %58 : vector<2x128xf32>
    %60 = arith.index_cast %arg0 : i32 to index
    %c11 = arith.constant 11 : index
    %61 = memref.load %arg2[%60, %c11] : memref<2x12xf32, #tpu.memory_space<smem>>
    %62 = vector.broadcast %61 : f32 to vector<2x128xf32>
    %63 = arith.mulf %62, %7 : vector<2x128xf32>
    %64 = arith.addf %59, %63 : vector<2x128xf32>
    %cst = arith.constant 1.000000e-07 : f32
    %65 = vector.broadcast %cst : f32 to vector<2x128xf32>
    %66 = arith.addf %64, %65 : vector<2x128xf32>
    %67 = tpu.reciprocal %66 {approx = true} : vector<2x128xf32> -> vector<2x128xf32>
    %68 = arith.mulf %66, %67 : vector<2x128xf32>
    %cst_16 = arith.constant 2.000000e+00 : f32
    %69 = vector.broadcast %cst_16 : f32 to vector<2x128xf32>
    %70 = arith.subf %69, %68 : vector<2x128xf32>
    %71 = arith.mulf %67, %70 : vector<2x128xf32>
    %72 = arith.mulf %26, %71 : vector<2x128xf32>
    %cst_17 = arith.constant 1.000000e+00 : f32
    %73 = vector.broadcast %cst_17 : f32 to vector<2x128xf32>
    %74 = arith.subf %72, %73 : vector<2x128xf32>
    %c0_18 = arith.constant 0 : index
    %c0_19 = arith.constant 0 : index
    %c0_20 = arith.constant 0 : index
    %c0_21 = arith.constant 0 : index
    %75 = vector.load %arg4[%c0_18, %c0_19, %c0_20, %c0_21] : memref<1x2x2x128xf32, #tpu.memory_space<vmem>>, vector<1x1x2x128xf32>
    %76 = vector.shape_cast %75 : vector<1x1x2x128xf32> to vector<2x128xf32>
    %77 = vector.shape_cast %74 : vector<2x128xf32> to vector<1x1x2x128xf32>
    tpu.vector_store %arg4[%c0_18, %c0_19, %c0_20, %c0_21], %77 {strides = array<i32>} : memref<1x2x2x128xf32, #tpu.memory_space<vmem>>, vector<1x1x2x128xf32>,
    %78 = arith.mulf %45, %71 : vector<2x128xf32>
    %cst_22 = arith.constant 1.000000e+00 : f32
    %79 = vector.broadcast %cst_22 : f32 to vector<2x128xf32>
    %80 = arith.subf %78, %79 : vector<2x128xf32>
    %c0_23 = arith.constant 0 : index
    %c1_24 = arith.constant 1 : index
    %c0_25 = arith.constant 0 : index
    %c0_26 = arith.constant 0 : index
    %81 = vector.load %arg4[%c0_23, %c1_24, %c0_25, %c0_26] : memref<1x2x2x128xf32, #tpu.memory_space<vmem>>, vector<1x1x2x128xf32>
    %82 = vector.shape_cast %81 : vector<1x1x2x128xf32> to vector<2x128xf32>
    %83 = vector.shape_cast %80 : vector<2x128xf32> to vector<1x1x2x128xf32>
    tpu.vector_store %arg4[%c0_23, %c1_24, %c0_25, %c0_26], %83 {strides = array<i32>} : memref<1x2x2x128xf32, #tpu.memory_space<vmem>>, vector<1x1x2x128xf32>,
    return
  }
  func.func @transform_0(%arg0: i32, %arg1: i32, %arg2: memref<2x12xf32, #tpu.memory_space<smem>>) -> (i32, i32, i32, i32) {
    %c0_i32 = arith.constant 0 : i32
    %c0_i32_0 = arith.constant 0 : i32
    %c0_i32_1 = arith.constant 0 : i32
    return %arg0, %c0_i32, %arg1, %c0_i32_0 : i32, i32, i32, i32
  }
  func.func @transform_1(%arg0: i32, %arg1: i32, %arg2: memref<2x12xf32, #tpu.memory_space<smem>>) -> (i32, i32, i32, i32) {
    %c0_i32 = arith.constant 0 : i32
    %c0_i32_0 = arith.constant 0 : i32
    %c0_i32_1 = arith.constant 0 : i32
    return %arg0, %c0_i32, %arg1, %c0_i32_0 : i32, i32, i32, i32
  }
}

</mosaic_0001>

<llo_original>
// kernel: tpu_custom_call.1
$region0: #{tpu_custom_call.1}
  #allocation0 [shape = 'u32[]', space=smem, size = 0x4, offset = 0x4, fixed_abs, tag = 'smem constant byte address 0x4 - core index']
  #allocation1 [shape = 'u32[144,128]{1,0:T(1,128)}', space=vmem, size = 0x12000, scoped, tag = 'internal scratch']
  #allocation2 [shape = 's32[1]{0}', space=sflag, size = 0x4, scoped, tag = 'scoped memory for tpu_custom_call.1']
  #allocation3 [shape = 'u8[1024]{0}', space=smem, size = 0x400, scoped, tag = 'prefetched SMEM operand 0']
  %s0 = inlined_call_operand.hbm [shape: f32[2,12], index: 0, kind: input, shape index: {}]
  %s1 = inlined_call_operand.hbm [shape: f32[2,4,2,128], index: 1, kind: input, shape index: {}]
  %s2 = inlined_call_operand.hbm [shape: f32[2,2,2,128], index: 2, kind: output, shape index: {}]
  %s3 = sld [smem:[#allocation0]]
  $region41: #{tpu_custom_call.1} parent=0
    _
  %s5 = ssub.s32 1, %s3
  %s6 = scalar_select 0, %s5, %s3
  %8 = dma.hbm_to_smem %s0, 32, [#allocation3], [#allocation2]
  %9 = dma.done [#allocation2], 32
  %10 = sfence
  $region1: #{tpu_custom_call.1} parent=0
    #allocation4 [shape = 'u8[8192]{0}', space=vmem, size = 0x2000, scoped, tag = 'input window, operand 1']
    #allocation5 [shape = 's32[2]{0}', space=sflag, size = 0x8, scoped, tag = 'scoped memory for tpu_custom_call.1']
    #allocation6 [shape = 's32[2]{0}', space=sflag, size = 0x8, scoped, tag = 'scoped memory for tpu_custom_call.1']
    #allocation7 [shape = 'u8[4096]{0}', space=vmem, size = 0x1000, scoped, tag = 'output window, operand 0']
    %11 = vsyncpa [#allocation5], 0
    %s12 = scalar_lea.sflag [#allocation5], 1
    %13 = vsyncpa %s12, 0
    %14 = vsyncpa [#allocation6], 0
    %s15 = scalar_lea.sflag [#allocation6], 1
    %16 = vsyncpa %s15, 0
    loop: start=0, step=1, limit=4
    $region2: #{tpu_custom_call.1} parent=1 // loop_pre_header
      _
    $region3: #{tpu_custom_call.1} parent=1 // loop_header
      %s18 = sphi 0, %s22
      %p19 = scmp.ge.s32.totalorder %s18, 4
      %s25 = sphi 0, %s37
      %s26 = sphi 0, %s33
      %s27 = sphi 0, %s25
      %s28 = sphi 0, %s26
      %s29 = sphi 0, %s27
      %s30 = sphi 0, %s28
      %s42 = sphi 0, %s44
      %s45 = sphi 0, %s42
      %s46 = sphi 0, %s45
      %s62 = sphi 0, %s46
      %s70 = sphi 0, %s72
      %s73 = sphi 0, %s70
      %s74 = sphi 0, %s73
      %s90 = sphi 0, %s74
    $region4: #{tpu_custom_call.1} parent=1 // loop_header_branch
      %21 = sbr.rel (%p19) target = $region8
    $region5: #{tpu_custom_call.1} parent=1 // loop_body
      %s23 = ssub.s32 %s18, 1
      %s24 = ssub.s32 %s18, 2
      %s31 = sadd.s32 1, %s26
      %p32 = scmp.ge.s32.totalorder %s31, 1
      %s33 = scalar_select %p32, 0, %s31
      %s34 = sadd.s32 1, %s25
      %s35 = scalar_select %p32, %s34, %s25
      %p36 = scmp.ge.s32.totalorder %s35, 2
      %s37 = scalar_select %p36, 0, %s35
      %s38 = ssub.s32 %s25, %s37
      %s39 = ssub.s32 %s26, %s33
      %s40 = sor.u32 %s38, %s39
      %p41 = scmp.eq.s32.totalorder %s40, 0
      %s43 = sadd.s32 %s42, 1
      %s44 = scalar_select %p41, %s42, %s43
      %p47 = pneg %p41
      %p48 = scmp.eq.s32.totalorder %s18, 1
      %p49 = por %p47, %p48
      %p50 = scmp.ne.s32.totalorder %s42, %s45
      %p51 = scmp.eq.s32.totalorder %s18, 0
      %p52 = por %p50, %p51
      %p53 = scmp.ne.s32.totalorder %s42, %s45
      %p54 = scmp.eq.s32.totalorder %s23, 1
      %p55 = por %p53, %p54
      %p56 = scmp.ne.s32.totalorder %s45, %s46
      %p57 = scmp.eq.s32.totalorder %s23, 0
      %p58 = por %p56, %p57
      %p59 = scmp.ne.s32.totalorder %s45, %s46
      %p60 = scmp.eq.s32.totalorder %s24, 1
      %p61 = por %p59, %p60
      %p63 = scmp.ne.s32.totalorder %s46, %s62
      %p64 = scmp.eq.s32.totalorder %s24, 0
      %p65 = por %p63, %p64
      %s66 = ssub.s32 %s25, %s37
      %s67 = ssub.s32 %s26, %s33
      %s68 = sor.u32 %s66, %s67
      %p69 = scmp.eq.s32.totalorder %s68, 0
      %s71 = sadd.s32 %s70, 1
      %s72 = scalar_select %p69, %s70, %s71
      %p75 = pneg %p69
      %p76 = scmp.eq.s32.totalorder %s18, 1
      %p77 = por %p75, %p76
      %p78 = scmp.ne.s32.totalorder %s70, %s73
      %p79 = scmp.eq.s32.totalorder %s18, 0
      %p80 = por %p78, %p79
      %p81 = scmp.ne.s32.totalorder %s70, %s73
      %p82 = scmp.eq.s32.totalorder %s23, 1
      %p83 = por %p81, %p82
      %p84 = scmp.ne.s32.totalorder %s73, %s74
      %p85 = scmp.eq.s32.totalorder %s23, 0
      %p86 = por %p84, %p85
      %p87 = scmp.ne.s32.totalorder %s73, %s74
      %p88 = scmp.eq.s32.totalorder %s24, 1
      %p89 = por %p87, %p88
      %p91 = scmp.ne.s32.totalorder %s74, %s90
      %p92 = scmp.eq.s32.totalorder %s24, 0
      %p93 = por %p91, %p92
      %p94 = scmp.le.s32.totalorder 1, %s18
      %p95 = scmp.lt.s32.totalorder %s18, 3
      %p96 = pnand %p94, %p95
      %p97 = pneg %p96
      // Predicated region
      $region9: #{tpu_custom_call.1} parent=5 // pred_check
        _
      $region10: #{tpu_custom_call.1} parent=5 // pred_check_branch
        %99 = sbr.rel (%p96) target = $region12
      $region11: #{tpu_custom_call.1} parent=5 // pred_region
        %s100 = ssub.s32 %s18, 1
      $region12: #{tpu_custom_call.1} parent=5 // pred_fallthru
        _
      %p101 = scmp.lt.s32.totalorder %s18, 2
      // Predicated region
      $region13: #{tpu_custom_call.1} parent=5 // pred_check
        %p102 = pneg %p101
      $region14: #{tpu_custom_call.1} parent=5 // pred_check_branch
        %104 = sbr.rel (%p102) target = $region16
      $region15: #{tpu_custom_call.1} parent=5 // pred_region
        // Predicated region
        $region17: #{tpu_custom_call.1} parent=15 // pred_check
          %p105 = pneg %p52
        $region18: #{tpu_custom_call.1} parent=15 // pred_check_branch
          %107 = sbr.rel (%p105) target = $region20
        $region19: #{tpu_custom_call.1} parent=15 // pred_region
          %s108 = sand.u32 %s42, 1
          %s109 = scalar_lea.sflag [#allocation5], %s108
          %s110 = sand.u32 %s42, 1
          %s111 = smul.addr %s110, 8
          %s112 = scalar_lea.vmem [#allocation4], %s111
          %s114 = ssub.s32 128, 128
          %115 = vsyncadd %s109, %s114
          %s116 = smul.addr %s25, 4
          %s117 = sadd.s32 %s26, %s116
          %s118 = smul.addr %s117, 32
          %s119 = scalar_lea.hbm %s1, %s118
          %s120 = sshll.u32 %s112, 4
          %s121 = int_to_ptr.vmem [resolvable:$true] %s120
          %126 = dma.hbm_to_vmem [thread:$0]  %s119, 128, %s121, %s109, 32, 32, 2
        $region20: #{tpu_custom_call.1} parent=15 // pred_fallthru
          _
      $region16: #{tpu_custom_call.1} parent=5 // pred_fallthru
        _
      %p127 = scmp.le.s32.totalorder 1, %s18
      %p128 = scmp.lt.s32.totalorder %s18, 3
      %p129 = pnand %p127, %p128
      %p130 = pneg %p129
      // Predicated region
      $region21: #{tpu_custom_call.1} parent=5 // pred_check
        _
      $region22: #{tpu_custom_call.1} parent=5 // pred_check_branch
        %132 = sbr.rel (%p129) target = $region24
      $region23: #{tpu_custom_call.1} parent=5 // pred_region
        %s133 = ssub.s32 %s18, 1
        %s134 = sand.u32 %s45, 1
        %s135 = scalar_lea.sflag [#allocation5], %s134
        %s136 = sand.u32 %s45, 1
        %s137 = smul.addr %s136, 8
        %s138 = scalar_lea.vmem [#allocation4], %s137
        // Predicated region
        $region25: #{tpu_custom_call.1} parent=23 // pred_check
          %p139 = pneg %p58
        $region26: #{tpu_custom_call.1} parent=23 // pred_check_branch
          %141 = sbr.rel (%p139) target = $region28
        $region27: #{tpu_custom_call.1} parent=23 // pred_region
          %142 = dma.done %s135, 128
        $region28: #{tpu_custom_call.1} parent=23 // pred_fallthru
          _
        %s143 = sand.u32 %s45, 1
        %s144 = scalar_lea.sflag [#allocation5], %s143
        %s145 = sand.u32 %s45, 1
        %s146 = smul.addr %s145, 8
        %s147 = scalar_lea.vmem [#allocation4], %s146
        %p148 = pneg %p58
        %p149 = pneg %p55
        %p150 = pneg %p86
        %p151 = pneg %p83
        %s152 = sand.u32 %s73, 1
        %s153 = scalar_lea.sflag [#allocation6], %s152
        %s154 = sand.u32 %s73, 1
        %s155 = smul.addr %s154, 4
        %s156 = scalar_lea.vmem [#allocation7], %s155
        %v157 = vld [vmem:[%s138] sm:$0x3]
        %s158 = scalar_lea.vmem %s138, 2 [#allocation4]
        %v159 = vld [vmem:[%s158] sm:$0x3]
        %s160 = scalar_lea.vmem %s138, 4 [#allocation4]
        %v161 = vld [vmem:[%s160] sm:$0x3]
        %s162 = scalar_lea.vmem %s138, 6 [#allocation4]
        %v163 = vld [vmem:[%s162] sm:$0x3]
        %s164 = smul.u32 %s27, 128
        %s165 = sld [smem:[#allocation3 + %s164]]
        %v166 = vstv %s165
        %v167 = vmul.f32 %v166, %v157
        %s168 = sadd.s32 %s164, 1
        %s169 = sld [smem:[#allocation3 + %s168]]
        %v170 = vstv %s169
        %v171 = vmul.f32 %v170, %v159
        %v172 = vadd.f32 %v167, %v171
        %s173 = sadd.s32 %s164, 2
        %s174 = sld [smem:[#allocation3 + %s173]]
        %v175 = vstv %s174
        %v176 = vmul.f32 %v175, %v161
        %v177 = vadd.f32 %v172, %v176
        %s178 = sadd.s32 %s164, 3
        %s179 = sld [smem:[#allocation3 + %s178]]
        %v180 = vstv %s179
        %v181 = vmul.f32 %v180, %v163
        %v182 = vadd.f32 %v177, %v181
        %s183 = sadd.s32 %s164, 4
        %s184 = sld [smem:[#allocation3 + %s183]]
        %v185 = vstv %s184
        %v186 = vmul.f32 %v185, %v157
        %s187 = sadd.s32 %s164, 5
        %s188 = sld [smem:[#allocation3 + %s187]]
        %v189 = vstv %s188
        %v190 = vmul.f32 %v189, %v159
        %v191 = vadd.f32 %v186, %v190
        %s192 = sadd.s32 %s164, 6
        %s193 = sld [smem:[#allocation3 + %s192]]
        %v194 = vstv %s193
        %v195 = vmul.f32 %v194, %v161
        %v196 = vadd.f32 %v191, %v195
        %s197 = sadd.s32 %s164, 7
        %s198 = sld [smem:[#allocation3 + %s197]]
        %v199 = vstv %s198
        %v200 = vmul.f32 %v199, %v163
        %v201 = vadd.f32 %v196, %v200
        %s202 = sadd.s32 %s164, 8
        %s203 = sld [smem:[#allocation3 + %s202]]
        %v204 = vstv %s203
        %v205 = vmul.f32 %v204, %v157
        %s206 = sadd.s32 %s164, 9
        %s207 = sld [smem:[#allocation3 + %s206]]
        %v208 = vstv %s207
        %v209 = vmul.f32 %v208, %v159
        %v210 = vadd.f32 %v205, %v209
        %s211 = sadd.s32 %s164, 10
        %s212 = sld [smem:[#allocation3 + %s211]]
        %v213 = vstv %s212
        %v214 = vmul.f32 %v213, %v161
        %v215 = vadd.f32 %v210, %v214
        %s216 = sadd.s32 %s164, 11
        %s217 = sld [smem:[#allocation3 + %s216]]
        %v218 = vstv %s217
        %v219 = vmul.f32 %v218, %v163
        %v220 = vadd.f32 %v215, %v219
        %v221 = vadd.f32 %v220, 1e-07
        %v222 = vrcp.pop %v221
        %v223 = vmul.f32 %v221, %v222
        %v224 = vsub.f32 2.0, %v223
        %v225 = vmul.f32 %v222, %v224
        %v226 = vmul.f32 %v182, %v225
        %v227 = vsub.f32 %v226, 1.0
        %228 = vst [vmem:[%s156] sm:$0x3] %v227
        %v229 = vmul.f32 %v201, %v225
        %v230 = vsub.f32 %v229, 1.0
        %s231 = scalar_lea.vmem %s156, 2 [#allocation7]
        %232 = vst [vmem:[%s231] sm:$0x3] %v230
        %s233 = sand.u32 %s73, 1
        %s234 = scalar_lea.sflag [#allocation6], %s233
        %s235 = sand.u32 %s73, 1
        %s236 = smul.addr %s235, 4
        %s237 = scalar_lea.vmem [#allocation7], %s236
        // Predicated region
        $region29: #{tpu_custom_call.1} parent=23 // pred_check
          %p238 = pneg %p83
        $region30: #{tpu_custom_call.1} parent=23 // pred_check_branch
          %240 = sbr.rel (%p238) target = $region32
        $region31: #{tpu_custom_call.1} parent=23 // pred_region
          %s242 = ssub.s32 64, 64
          %243 = vsyncadd %s234, %s242
          %s244 = smul.addr %s27, 2
          %s245 = sadd.s32 %s28, %s244
          %s246 = smul.addr %s245, 32
          %s247 = scalar_lea.hbm %s2, %s246
          %s248 = sshll.u32 %s237, 4
          %s249 = int_to_ptr.vmem [resolvable:$true] %s248
          %254 = dma.vmem_to_hbm [thread:$0]  %s249, 64, %s247, %s234, 32, 32, 2
        $region32: #{tpu_custom_call.1} parent=23 // pred_fallthru
          _
      $region24: #{tpu_custom_call.1} parent=5 // pred_fallthru
        _
      %p255 = scmp.le.s32.totalorder 2, %s18
      // Predicated region
      $region33: #{tpu_custom_call.1} parent=5 // pred_check
        %p256 = pneg %p255
      $region34: #{tpu_custom_call.1} parent=5 // pred_check_branch
        %258 = sbr.rel (%p256) target = $region36
      $region35: #{tpu_custom_call.1} parent=5 // pred_region
        %s259 = ssub.s32 %s18, 2
        // Predicated region
        $region37: #{tpu_custom_call.1} parent=35 // pred_check
          %p260 = pneg %p89
        $region38: #{tpu_custom_call.1} parent=35 // pred_check_branch
          %262 = sbr.rel (%p260) target = $region40
        $region39: #{tpu_custom_call.1} parent=35 // pred_region
          %s263 = sand.u32 %s74, 1
          %s264 = scalar_lea.sflag [#allocation6], %s263
          %s265 = sand.u32 %s74, 1
          %s266 = smul.addr %s265, 4
          %s267 = scalar_lea.vmem [#allocation7], %s266
          %268 = dma.done %s264, 64
        $region40: #{tpu_custom_call.1} parent=35 // pred_fallthru
          _
      $region36: #{tpu_custom_call.1} parent=5 // pred_fallthru
        _
    $region6: #{tpu_custom_call.1} parent=1 // loop_footer
      %s22 = sadd.s32 1, %s18
    $region7: #{tpu_custom_call.1} parent=1 // loop_footer_branch
      %17 = sbr.rel target = $region3
    $region8: #{tpu_custom_call.1} parent=1 // loop_exit
      _
    %269 = vsyncpa [#allocation5], 1
    %s270 = scalar_lea.sflag [#allocation5], 1
    %271 = vsyncpa %s270, 1
    %272 = vsyncpa [#allocation6], 1
    %s273 = scalar_lea.sflag [#allocation6], 1
    %274 = vsyncpa %s273, 1

</llo_original>
